<compile_context>
chip_gen: v7x
topology: tpu7x:2x2x1
jax: 0.10.0
libtpu: 0.0.40
codegen_flags: <defaults>
</compile_context>

<pallas_src>
import functools

import jax
import jax.numpy as jnp
from jax import lax
from jax.experimental import pallas as pl
from jax.experimental.pallas import tpu as pltpu

BN_EPS = 1e-5


def _round_up(x, m):
    return ((x + m - 1) // m) * m


# -----------------------------------------------------------------------------
# Kernel
# -----------------------------------------------------------------------------
def _fused_kernel(idx_ref,            # [TILE_B, 3] int32 (offset-adjusted indices)
                  pall_ref,           # [K_PAD, H]  stacked projected tables + b1 row
                  w2_ref, b2_ref,     # [H, H], [1, H]   (BN-folded)
                  w3_ref, b3_ref,     # [1, H], [1, 1]
                  o_ref,              # [1, TILE_B] lane-dense output
                  *, bias_col):
    tile_b = idx_ref.shape[0]
    k_pad = pall_ref.shape[0]

    idx = idx_ref[...]                                       # (TILE_B, 3) int32

    # One multi-hot over the combined vocab: the three vocab ranges and the
    # bias column are disjoint, so OR-ing four compares against one lane-iota
    # gives an exact {row-gather + row-gather + row-gather + b1} when pushed
    # through a single K=k_pad MXU matmul.
    iota = lax.broadcasted_iota(jnp.int32, (tile_b, k_pad), 1)
    multi_hot = ((iota == idx[:, 0:1]) |
                 (iota == idx[:, 1:2]) |
                 (iota == idx[:, 2:3]) |
                 (iota == bias_col)).astype(jnp.float32)

    # ---- Layer 1 (gather + Linear + BN folded, bias via always-hot row) -> ReLU
    h = jnp.dot(multi_hot, pall_ref[...], preferred_element_type=jnp.float32)
    h = jnp.maximum(h, 0.0)

    # ---- Layer 2 (Linear + BN folded) -> ReLU
    h = jnp.dot(h, w2_ref[...], preferred_element_type=jnp.float32) + b2_ref[...]
    h = jnp.maximum(h, 0.0)

    # ---- Layer 3: contract against the w3 row -> lane-dense (1, TILE_B)
    out_row = lax.dot_general(w3_ref[...], h, (((1,), (1,)), ((), ())),
                              preferred_element_type=jnp.float32)
    o_ref[...] = (out_row + b3_ref[...]).astype(o_ref.dtype)


# -----------------------------------------------------------------------------
# Host-side parameter folding (done ONCE, f32)
# -----------------------------------------------------------------------------
def fold_params(params, n_input):
    hp = lax.Precision.HIGHEST

    s1 = params["g1"] * lax.rsqrt(params["rv1"] + BN_EPS)               # [1, H]
    w1s = params["W1"] * s1                                              # [3n, H]
    b1f = (params["b1"] - params["rm1"]) * s1 + params["beta1"]          # [1, H]

    s2 = params["g2"] * lax.rsqrt(params["rv2"] + BN_EPS)
    w2f = params["W2"] * s2                                              # [H, H]
    b2f = (params["b2"] - params["rm2"]) * s2 + params["beta2"]          # [1, H]

    # Pre-project each embedding table through its slice of the folded W1.
    p_cell = jnp.dot(params["E_cell"], w1s[:n_input], precision=hp)      # [Vc, H]
    p_comp = jnp.dot(params["E_comp"], w1s[n_input:2 * n_input], precision=hp)
    p_gene = jnp.dot(params["E_gene"], w1s[2 * n_input:], precision=hp)

    v_cell, v_comp, v_gene = p_cell.shape[0], p_comp.shape[0], p_gene.shape[0]
    bias_col = v_cell + v_comp + v_gene          # always-hot lane -> adds b1f
    k_pad = _round_up(bias_col + 1, 128)         # fill MXU depth / lane width

    p_all = jnp.concatenate([p_cell, p_comp, p_gene, b1f], axis=0)       # [V+1, H]
    p_all = jnp.pad(p_all, ((0, k_pad - p_all.shape[0]), (0, 0)))        # [K_PAD, H]

    return {
        "P_all": p_all,
        "bias_col": int(bias_col),
        "offsets": (0, v_cell, v_cell + v_comp),
        "W2": w2f, "b2": b2f,
        "w3": params["W3"].T,                                            # [1, H]
        "b3": params["b3"],                                              # [1, 1]
    }


# -----------------------------------------------------------------------------
# Wrapper
# -----------------------------------------------------------------------------
def deep_tensor_factorization_forward(folded, cell_idx, comp_idx, gene_idx):
    B = cell_idx.shape[0]

    # Tile: multiple of 128 (unmasked lane-dense output stores), up to 1024 to
    # amortize per-step overhead, capped so mid/large batches keep >= 2 grid
    # steps (feeds both v7x TensorCores via the "parallel" axis).
    tile_b = min(1024, max(128, _round_up(-(-B // 2), 128)))
    num_tiles = -(-B // tile_b)
    b_pad = num_tiles * tile_b

    # Pack the three index vectors (with per-table vocab offsets) into one
    # [b_pad, 3] operand -> one DMA per grid step.
    o_cell, o_comp, o_gene = folded["offsets"]
    idx = jnp.stack([cell_idx.astype(jnp.int32) + o_cell,
                     comp_idx.astype(jnp.int32) + o_comp,
                     gene_idx.astype(jnp.int32) + o_gene], axis=1)        # [B, 3]
    if b_pad != B:
        idx = jnp.pad(idx, ((0, b_pad - B), (0, 0)))   # padded rows -> row 0, discarded

    def resident(arr):  # whole array, constant index_map -> stays in VMEM
        return pl.BlockSpec(arr.shape, lambda i: (0, 0))

    operands = (idx, folded["P_all"], folded["W2"], folded["b2"],
                folded["w3"], folded["b3"])
    in_specs = ([pl.BlockSpec((tile_b, 3), lambda i: (i, 0))]
                + [resident(a) for a in operands[1:]])

    out = pl.pallas_call(
        functools.partial(_fused_kernel, bias_col=folded["bias_col"]),
        out_shape=jax.ShapeDtypeStruct((1, b_pad), jnp.float32),
        grid=(num_tiles,),
        in_specs=in_specs,
        out_specs=pl.BlockSpec((1, tile_b), lambda i: (0, i)),
        compiler_params=pltpu.CompilerParams(
            dimension_semantics=("parallel",)),
    )(*operands)

    return out[0, :B].reshape(B, 1)


# -----------------------------------------------------------------------------
# Pure-JAX reference (unfolded, follows the PyTorch module literally)
# -----------------------------------------------------------------------------
def _reference_forward(params, cell_idx, comp_idx, gene_idx):
    hp = lax.Precision.HIGHEST
    x = jnp.concatenate(
        [params["E_cell"][cell_idx],
         params["E_comp"][comp_idx],
         params["E_gene"][gene_idx]], axis=1)
    h = jnp.dot(x, params["W1"], precision=hp) + params["b1"]
    h = (h - params["rm1"]) / jnp.sqrt(params["rv1"] + BN_EPS) * params["g1"] + params["beta1"]
    h = jnp.maximum(h, 0.0)
    h = jnp.dot(h, params["W2"], precision=hp) + params["b2"]
    h = (h - params["rm2"]) / jnp.sqrt(params["rv2"] + BN_EPS) * params["g2"] + params["beta2"]
    h = jnp.maximum(h, 0.0)
    return jnp.dot(h, params["W3"], precision=hp) + params["b3"]


def init_params(key, n_input, n_hiddens, n_cell_types, n_compounds, n_genes):
    n_factors = 3 * n_input
    ks = jax.random.split(key, 12)
    normal = functools.partial(jax.random.normal, dtype=jnp.float32)
    return {
        # Embedding tables (rows = vocabulary, cols = embedding dim n_input).
        "E_cell": 0.1 * normal(ks[0], (n_cell_types, n_input)),
        "E_comp": 0.1 * normal(ks[1], (n_compounds, n_input)),
        "E_gene": 0.1 * normal(ks[2], (n_genes, n_input)),
        # Linear 1: n_factors -> n_hiddens (stored as [in, out]).
        "W1": 0.05 * normal(ks[3], (n_factors, n_hiddens)),
        "b1": 0.01 * normal(ks[4], (1, n_hiddens)),
        # BatchNorm1d(n_hiddens) #1 (eval-mode running stats).
        "g1": 1.0 + 0.1 * normal(ks[5], (1, n_hiddens)),
        "beta1": 0.1 * normal(ks[6], (1, n_hiddens)),
        "rm1": 0.05 * normal(ks[7], (1, n_hiddens)),
        "rv1": 1.0 + 0.1 * jnp.abs(normal(ks[8], (1, n_hiddens))),
        # Linear 2: n_hiddens -> n_hiddens.
        "W2": 0.05 * normal(ks[9], (n_hiddens, n_hiddens)),
        "b2": 0.01 * normal(ks[10], (1, n_hiddens)),
        # BatchNorm1d(n_hiddens) #2.
        "g2": jnp.ones((1, n_hiddens), jnp.float32),
        "beta2": jnp.zeros((1, n_hiddens), jnp.float32),
        "rm2": jnp.zeros((1, n_hiddens), jnp.float32),
        "rv2": jnp.ones((1, n_hiddens), jnp.float32),
        # Linear 3: n_hiddens -> 1.
        "W3": 0.05 * normal(ks[11], (n_hiddens, 1)),
        "b3": jnp.zeros((1, 1), jnp.float32),
    }


if __name__ == "__main__":
    # Small shapes consistent with the module (n_input -> embedding dim,
    # n_hiddens -> MLP width, n_factors = 3 * n_input from the concat).
    n_input = 32
    n_hiddens = 128
    n_cell_types, n_compounds, n_genes = 10, 12, 50
    batch = 8

    key = jax.random.PRNGKey(0)
    pkey, i0, i1, i2 = jax.random.split(key, 4)
    params = init_params(pkey, n_input, n_hiddens, n_cell_types, n_compounds, n_genes)
    folded = fold_params(params, n_input)

    cell_idx = jax.random.randint(i0, (batch,), 0, n_cell_types, dtype=jnp.int32)
    comp_idx = jax.random.randint(i1, (batch,), 0, n_compounds, dtype=jnp.int32)
    gene_idx = jax.random.randint(i2, (batch,), 0, n_genes, dtype=jnp.int32)

    out = deep_tensor_factorization_forward(folded, cell_idx, comp_idx, gene_idx)
    out = jax.block_until_ready(out)

    ref = _reference_forward(params, cell_idx, comp_idx, gene_idx)
    assert out.shape == (batch, 1), out.shape
    assert jnp.allclose(out, ref, atol=5e-5, rtol=1e-4), (out, ref)

    print("KERNEL_OK")
</pallas_src>

<mosaic_0001>
module attributes {stable_mosaic.version = 11 : i64} {
  func.func @_fused_kernel(%arg0: i32, %arg1: memref<128x3xi32, #tpu.memory_space<vmem>>, %arg2: memref<128x128xf32, #tpu.memory_space<vmem>>, %arg3: memref<128x128xf32, #tpu.memory_space<vmem>>, %arg4: memref<1x128xf32, #tpu.memory_space<vmem>>, %arg5: memref<1x128xf32, #tpu.memory_space<vmem>>, %arg6: memref<1x1xf32, #tpu.memory_space<vmem>>, %arg7: memref<1x128xf32, #tpu.memory_space<vmem>>) attributes {dimension_semantics = [#tpu.dimension_semantics<parallel>], iteration_bounds = array<i64: 1>, scalar_prefetch = 0 : i64, scratch_operands = 0 : i64, tpu.core_type = #tpu.core_type<tc>, window_params = [{transform_indices = @transform_0, window_bounds = array<i64: 128, 3>}, {pipeline_mode = #tpu.pipeline_mode<synchronous>, transform_indices = @transform_1, window_bounds = array<i64: 128, 128>}, {pipeline_mode = #tpu.pipeline_mode<synchronous>, transform_indices = @transform_2, window_bounds = array<i64: 128, 128>}, {pipeline_mode = #tpu.pipeline_mode<synchronous>, transform_indices = @transform_3, window_bounds = array<i64: 1, 128>}, {pipeline_mode = #tpu.pipeline_mode<synchronous>, transform_indices = @transform_4, window_bounds = array<i64: 1, 128>}, {pipeline_mode = #tpu.pipeline_mode<synchronous>, transform_indices = @transform_5, window_bounds = array<i64: 1, 1>}, {transform_indices = @transform_6, window_bounds = array<i64: 1, 128>}]} {
    %c0 = arith.constant 0 : index
    %c0_0 = arith.constant 0 : index
    %0 = vector.load %arg1[%c0, %c0_0] : memref<128x3xi32, #tpu.memory_space<vmem>>, vector<128x3xi32>
    %1 = tpu.iota {dimensions = array<i32: 1>} : vector<128x128xi32>
    %2 = vector.extract_strided_slice %0 {offsets = [0, 0], sizes = [128, 1], strides = [1, 1]} : vector<128x3xi32> to vector<128x1xi32>
    %3 = vector.broadcast %2 : vector<128x1xi32> to vector<128x128xi32>
    %4 = arith.cmpi eq, %1, %3 : vector<128x128xi32>
    %5 = vector.extract_strided_slice %0 {offsets = [0, 1], sizes = [128, 1], strides = [1, 1]} : vector<128x3xi32> to vector<128x1xi32>
    %6 = vector.broadcast %5 : vector<128x1xi32> to vector<128x128xi32>
    %7 = arith.cmpi eq, %1, %6 : vector<128x128xi32>
    %8 = arith.ori %4, %7 : vector<128x128xi1>
    %9 = vector.extract_strided_slice %0 {offsets = [0, 2], sizes = [128, 1], strides = [1, 1]} : vector<128x3xi32> to vector<128x1xi32>
    %10 = vector.broadcast %9 : vector<128x1xi32> to vector<128x128xi32>
    %11 = arith.cmpi eq, %1, %10 : vector<128x128xi32>
    %12 = arith.ori %8, %11 : vector<128x128xi1>
    %c72_i32 = arith.constant 72 : i32
    %13 = vector.broadcast %c72_i32 : i32 to vector<128x128xi32>
    %14 = arith.cmpi eq, %1, %13 : vector<128x128xi32>
    %15 = arith.ori %12, %14 : vector<128x128xi1>
    %16 = arith.extui %15 : vector<128x128xi1> to vector<128x128xi32>
    %17 = arith.sitofp %16 : vector<128x128xi32> to vector<128x128xf32>
    %c0_1 = arith.constant 0 : index
    %c0_2 = arith.constant 0 : index
    %18 = vector.load %arg2[%c0_1, %c0_2] : memref<128x128xf32, #tpu.memory_space<vmem>>, vector<128x128xf32>
    %cst = arith.constant dense<0.000000e+00> : vector<128x128xf32>
    %19 = tpu.matmul %17, %18, %cst {dimension_numbers = #tpu.dot_dimension_numbers<[1], [0], [0], [1], [0, 0, 1, 1], [], []>} : vector<128x128xf32>, vector<128x128xf32>, vector<128x128xf32> -> vector<128x128xf32>
    %cst_3 = arith.constant 0.000000e+00 : f32
    %20 = vector.broadcast %cst_3 : f32 to vector<128x128xf32>
    %21 = arith.maximumf %19, %20 : vector<128x128xf32>
    %c0_4 = arith.constant 0 : index
    %c0_5 = arith.constant 0 : index
    %22 = vector.load %arg3[%c0_4, %c0_5] : memref<128x128xf32, #tpu.memory_space<vmem>>, vector<128x128xf32>
    %cst_6 = arith.constant dense<0.000000e+00> : vector<128x128xf32>
    %23 = tpu.matmul %21, %22, %cst_6 {dimension_numbers = #tpu.dot_dimension_numbers<[1], [0], [0], [1], [0, 0, 1, 1], [], []>} : vector<128x128xf32>, vector<128x128xf32>, vector<128x128xf32> -> vector<128x128xf32>
    %c0_7 = arith.constant 0 : index
    %c0_8 = arith.constant 0 : index
    %24 = vector.load %arg4[%c0_7, %c0_8] : memref<1x128xf32, #tpu.memory_space<vmem>>, vector<1x128xf32>
    %25 = vector.broadcast %24 : vector<1x128xf32> to vector<128x128xf32>
    %26 = arith.addf %23, %25 : vector<128x128xf32>
    %cst_9 = arith.constant 0.000000e+00 : f32
    %27 = vector.broadcast %cst_9 : f32 to vector<128x128xf32>
    %28 = arith.maximumf %26, %27 : vector<128x128xf32>
    %c0_10 = arith.constant 0 : index
    %c0_11 = arith.constant 0 : index
    %29 = vector.load %arg5[%c0_10, %c0_11] : memref<1x128xf32, #tpu.memory_space<vmem>>, vector<1x128xf32>
    %cst_12 = arith.constant dense<0.000000e+00> : vector<1x128xf32>
    %30 = tpu.matmul %29, %28, %cst_12 {dimension_numbers = #tpu.dot_dimension_numbers<[1], [1], [0], [0], [0, 0, 1, 0], [], []>} : vector<1x128xf32>, vector<128x128xf32>, vector<1x128xf32> -> vector<1x128xf32>
    %c0_13 = arith.constant 0 : index
    %c0_14 = arith.constant 0 : index
    %31 = vector.load %arg6[%c0_13, %c0_14] : memref<1x1xf32, #tpu.memory_space<vmem>>, vector<1x1xf32>
    %32 = vector.broadcast %31 : vector<1x1xf32> to vector<1x128xf32>
    %33 = arith.addf %30, %32 : vector<1x128xf32>
    %c0_15 = arith.constant 0 : index
    %c0_16 = arith.constant 0 : index
    %34 = vector.load %arg7[%c0_15, %c0_16] : memref<1x128xf32, #tpu.memory_space<vmem>>, vector<1x128xf32>
    tpu.vector_store %arg7[%c0_15, %c0_16], %33 {strides = array<i32>} : memref<1x128xf32, #tpu.memory_space<vmem>>, vector<1x128xf32>,
    return
  }
  func.func @transform_0(%arg0: i32) -> (i32, i32) {
    %c0_i32 = arith.constant 0 : i32
    %c0_i32_0 = arith.constant 0 : i32
    return %arg0, %c0_i32 : i32, i32
  }
  func.func @transform_1(%arg0: i32) -> (i32, i32) {
    %c0_i32 = arith.constant 0 : i32
    %c0_i32_0 = arith.constant 0 : i32
    %c0_i32_1 = arith.constant 0 : i32
    return %c0_i32, %c0_i32_0 : i32, i32
  }
  func.func @transform_2(%arg0: i32) -> (i32, i32) {
    %c0_i32 = arith.constant 0 : i32
    %c0_i32_0 = arith.constant 0 : i32
    %c0_i32_1 = arith.constant 0 : i32
    return %c0_i32, %c0_i32_0 : i32, i32
  }
  func.func @transform_3(%arg0: i32) -> (i32, i32) {
    %c0_i32 = arith.constant 0 : i32
    %c0_i32_0 = arith.constant 0 : i32
    %c0_i32_1 = arith.constant 0 : i32
    return %c0_i32, %c0_i32_0 : i32, i32
  }
  func.func @transform_4(%arg0: i32) -> (i32, i32) {
    %c0_i32 = arith.constant 0 : i32
    %c0_i32_0 = arith.constant 0 : i32
    %c0_i32_1 = arith.constant 0 : i32
    return %c0_i32, %c0_i32_0 : i32, i32
  }
  func.func @transform_5(%arg0: i32) -> (i32, i32) {
    %c0_i32 = arith.constant 0 : i32
    %c0_i32_0 = arith.constant 0 : i32
    %c0_i32_1 = arith.constant 0 : i32
    return %c0_i32, %c0_i32_0 : i32, i32
  }
  func.func @transform_6(%arg0: i32) -> (i32, i32) {
    %c0_i32 = arith.constant 0 : i32
    %c0_i32_0 = arith.constant 0 : i32
    return %c0_i32, %arg0 : i32, i32
  }
}

</mosaic_0001>

<llo_original>
// kernel: tpu_custom_call.1
$region0: #{tpu_custom_call.1}
  #allocation0 [shape = 'u32[]', space=smem, size = 0x4, offset = 0x4, fixed_abs, tag = 'smem constant byte address 0x4 - core index']
  #allocation1 [shape = 'u32[144,128]{1,0:T(1,128)}', space=vmem, size = 0x12000, scoped, tag = 'internal scratch']
  #allocation2 [shape = 'f32[1,1]{1,0:T(1,128)S(1)}', space=vmem, size = 0x200, scoped, tag = 'scoped memory for tpu_custom_call.1']
  %s0 = inlined_call_operand.vmem [shape: s32[128,3], index: 0, kind: input, shape index: {}]
  %s1 = inlined_call_operand.vmem [shape: f32[128,128], index: 1, kind: input, shape index: {}]
  %s2 = inlined_call_operand.hbm [shape: f32[128,128], index: 2, kind: input, shape index: {}]
  %s3 = inlined_call_operand.vmem [shape: f32[1,128], index: 3, kind: input, shape index: {}]
  %s4 = inlined_call_operand.vmem [shape: f32[1,128], index: 4, kind: input, shape index: {}]
  %s5 = inlined_call_operand.<no memory space> [shape: f32[1,1], index: 5, kind: input, shape index: {}]
  %s6 = inlined_call_operand.hbm [shape: f32[1,128], index: 6, kind: output, shape index: {}]
  %s7 = sld [smem:[#allocation0]]
  $region38: #{tpu_custom_call.1} parent=0
    _
  %s9 = ssub.s32 1, %s7
  %s10 = scalar_select 0, %s9, %s7
  %v11 = vstv %s5
  %12 = vst [vmem:[#allocation2] sm:$0x1] %v11
  $region1: #{tpu_custom_call.1} parent=0
    #allocation3 [shape = 'u8[65536]{0}', space=vmem, size = 0x10000, scoped, tag = 'input window, operand 2, single buffered']
    #allocation4 [shape = 's32[1]{0}', space=sflag, size = 0x4, scoped, tag = 'scoped memory for tpu_custom_call.1']
    #allocation5 [shape = 's32[1]{0}', space=sflag, size = 0x4, scoped, tag = 'scoped memory for tpu_custom_call.1']
    #allocation6 [shape = 'u8[512]{0}', space=vmem, size = 0x400, scoped, tag = 'output window, operand 0, single buffered']
    %13 = vsyncpa [#allocation4], 0
    %14 = vsyncpa [#allocation5], 0
    // Predicated region
    $region2: #{tpu_custom_call.1} parent=1 // pred_check
      _
    $region3: #{tpu_custom_call.1} parent=1 // pred_check_branch
      %16 = sbr.rel (0) target = $region5
    $region4: #{tpu_custom_call.1} parent=1 // pred_region
      _
    $region5: #{tpu_custom_call.1} parent=1 // pred_fallthru
      _
    // Predicated region
    $region6: #{tpu_custom_call.1} parent=1 // pred_check
      _
    $region7: #{tpu_custom_call.1} parent=1 // pred_check_branch
      %18 = sbr.rel (0) target = $region9
    $region8: #{tpu_custom_call.1} parent=1 // pred_region
      _
    $region9: #{tpu_custom_call.1} parent=1 // pred_fallthru
      _
    // Predicated region
    $region10: #{tpu_custom_call.1} parent=1 // pred_check
      _
    $region11: #{tpu_custom_call.1} parent=1 // pred_check_branch
      %20 = sbr.rel (0) target = $region13
    $region12: #{tpu_custom_call.1} parent=1 // pred_region
      %s22 = ssub.s32 2048, 2048
      %23 = vsyncadd [#allocation4], %s22
      %s24 = sshll.u32 [#allocation3], 4
      %s25 = int_to_ptr.vmem [resolvable:$true] %s24
      %30 = dma.hbm_to_vmem [thread:$0]  %s2, 2048, %s25, [#allocation4], 128, 128, 8
    $region13: #{tpu_custom_call.1} parent=1 // pred_fallthru
      _
    // Predicated region
    $region14: #{tpu_custom_call.1} parent=1 // pred_check
      _
    $region15: #{tpu_custom_call.1} parent=1 // pred_check_branch
      %32 = sbr.rel (0) target = $region17
    $region16: #{tpu_custom_call.1} parent=1 // pred_region
      _
    $region17: #{tpu_custom_call.1} parent=1 // pred_fallthru
      _
    // Predicated region
    $region18: #{tpu_custom_call.1} parent=1 // pred_check
      _
    $region19: #{tpu_custom_call.1} parent=1 // pred_check_branch
      %34 = sbr.rel (0) target = $region21
    $region20: #{tpu_custom_call.1} parent=1 // pred_region
      _
    $region21: #{tpu_custom_call.1} parent=1 // pred_fallthru
      _
    // Predicated region
    $region22: #{tpu_custom_call.1} parent=1 // pred_check
      _
    $region23: #{tpu_custom_call.1} parent=1 // pred_check_branch
      %36 = sbr.rel (0) target = $region25
    $region24: #{tpu_custom_call.1} parent=1 // pred_region
      _
    $region25: #{tpu_custom_call.1} parent=1 // pred_fallthru
      _
    // Predicated region
    $region26: #{tpu_custom_call.1} parent=1 // pred_check
      _
    $region27: #{tpu_custom_call.1} parent=1 // pred_check_branch
      %38 = sbr.rel (0) target = $region29
    $region28: #{tpu_custom_call.1} parent=1 // pred_region
      %39 = dma.done [#allocation4], 2048
    $region29: #{tpu_custom_call.1} parent=1 // pred_fallthru
      _
    %v40 = vld [vmem:[%s0] sm:$0xff]
    %v41 = vld [vmem:[%s0 + $0x8] sm:$0xff]
    %v42 = vld [vmem:[%s0 + $0x10] sm:$0xff]
    %v43 = vld [vmem:[%s0 + $0x18] sm:$0xff]
    %v44 = vld [vmem:[%s0 + $0x20] sm:$0xff]
    %v45 = vld [vmem:[%s0 + $0x28] sm:$0xff]
    %v46 = vld [vmem:[%s0 + $0x30] sm:$0xff]
    %v47 = vld [vmem:[%s0 + $0x38] sm:$0xff]
    %v48 = vld [vmem:[%s0 + $0x40] sm:$0xff]
    %v49 = vld [vmem:[%s0 + $0x48] sm:$0xff]
    %v50 = vld [vmem:[%s0 + $0x50] sm:$0xff]
    %v51 = vld [vmem:[%s0 + $0x58] sm:$0xff]
    %v52 = vld [vmem:[%s0 + $0x60] sm:$0xff]
    %v53 = vld [vmem:[%s0 + $0x68] sm:$0xff]
    %v54 = vld [vmem:[%s0 + $0x70] sm:$0xff]
    %v55 = vld [vmem:[%s0 + $0x78] sm:$0xff]
    %v56 = vlaneseq
    %v57 = vand.u32 %v56, 127
    %58 = vset.pattern.permute.xlu0 0
    %59 = vperm.xlu0 %58, %v40
    %v60 = vpop.permute.xlu0 %59
    %61 = vset.pattern.permute.xlu0 0
    %62 = vperm.xlu0 %61, %v41
    %v63 = vpop.permute.xlu0 %62
    %64 = vset.pattern.permute.xlu0 0
    %65 = vperm.xlu0 %64, %v42
    %v66 = vpop.permute.xlu0 %65
    %67 = vset.pattern.permute.xlu0 0
    %68 = vperm.xlu0 %67, %v43
    %v69 = vpop.permute.xlu0 %68
    %70 = vset.pattern.permute.xlu0 0
    %71 = vperm.xlu0 %70, %v44
    %v72 = vpop.permute.xlu0 %71
    %73 = vset.pattern.permute.xlu0 0
    %74 = vperm.xlu0 %73, %v45
    %v75 = vpop.permute.xlu0 %74
    %76 = vset.pattern.permute.xlu0 0
    %77 = vperm.xlu0 %76, %v46
    %v78 = vpop.permute.xlu0 %77
    %79 = vset.pattern.permute.xlu0 0
    %80 = vperm.xlu0 %79, %v47
    %v81 = vpop.permute.xlu0 %80
    %82 = vset.pattern.permute.xlu0 0
    %83 = vperm.xlu0 %82, %v48
    %v84 = vpop.permute.xlu0 %83
    %85 = vset.pattern.permute.xlu0 0
    %86 = vperm.xlu0 %85, %v49
    %v87 = vpop.permute.xlu0 %86
    %88 = vset.pattern.permute.xlu0 0
    %89 = vperm.xlu0 %88, %v50
    %v90 = vpop.permute.xlu0 %89
    %91 = vset.pattern.permute.xlu0 0
    %92 = vperm.xlu0 %91, %v51
    %v93 = vpop.permute.xlu0 %92
    %94 = vset.pattern.permute.xlu0 0
    %95 = vperm.xlu0 %94, %v52
    %v96 = vpop.permute.xlu0 %95
    %97 = vset.pattern.permute.xlu0 0
    %98 = vperm.xlu0 %97, %v53
    %v99 = vpop.permute.xlu0 %98
    %100 = vset.pattern.permute.xlu0 0
    %101 = vperm.xlu0 %100, %v54
    %v102 = vpop.permute.xlu0 %101
    %103 = vset.pattern.permute.xlu0 0
    %104 = vperm.xlu0 %103, %v55
    %v105 = vpop.permute.xlu0 %104
    %vm106 = vcmp.eq.s32.totalorder %v57, %v60
    %vm107 = vcmp.eq.s32.totalorder %v57, %v63
    %vm108 = vcmp.eq.s32.totalorder %v57, %v66
    %vm109 = vcmp.eq.s32.totalorder %v57, %v69
    %vm110 = vcmp.eq.s32.totalorder %v57, %v72
    %vm111 = vcmp.eq.s32.totalorder %v57, %v75
    %vm112 = vcmp.eq.s32.totalorder %v57, %v78
    %vm113 = vcmp.eq.s32.totalorder %v57, %v81
    %vm114 = vcmp.eq.s32.totalorder %v57, %v84
    %vm115 = vcmp.eq.s32.totalorder %v57, %v87
    %vm116 = vcmp.eq.s32.totalorder %v57, %v90
    %vm117 = vcmp.eq.s32.totalorder %v57, %v93
    %vm118 = vcmp.eq.s32.totalorder %v57, %v96
    %vm119 = vcmp.eq.s32.totalorder %v57, %v99
    %vm120 = vcmp.eq.s32.totalorder %v57, %v102
    %vm121 = vcmp.eq.s32.totalorder %v57, %v105
    %122 = vset.pattern.permute.xlu0 1
    %123 = vperm.xlu0 %122, %v40
    %v124 = vpop.permute.xlu0 %123
    %125 = vset.pattern.permute.xlu0 1
    %126 = vperm.xlu0 %125, %v41
    %v127 = vpop.permute.xlu0 %126
    %128 = vset.pattern.permute.xlu0 1
    %129 = vperm.xlu0 %128, %v42
    %v130 = vpop.permute.xlu0 %129
    %131 = vset.pattern.permute.xlu0 1
    %132 = vperm.xlu0 %131, %v43
    %v133 = vpop.permute.xlu0 %132
    %134 = vset.pattern.permute.xlu0 1
    %135 = vperm.xlu0 %134, %v44
    %v136 = vpop.permute.xlu0 %135
    %137 = vset.pattern.permute.xlu0 1
    %138 = vperm.xlu0 %137, %v45
    %v139 = vpop.permute.xlu0 %138
    %140 = vset.pattern.permute.xlu0 1
    %141 = vperm.xlu0 %140, %v46
    %v142 = vpop.permute.xlu0 %141
    %143 = vset.pattern.permute.xlu0 1
    %144 = vperm.xlu0 %143, %v47
    %v145 = vpop.permute.xlu0 %144
    %146 = vset.pattern.permute.xlu0 1
    %147 = vperm.xlu0 %146, %v48
    %v148 = vpop.permute.xlu0 %147
    %149 = vset.pattern.permute.xlu0 1
    %150 = vperm.xlu0 %149, %v49
    %v151 = vpop.permute.xlu0 %150
    %152 = vset.pattern.permute.xlu0 1
    %153 = vperm.xlu0 %152, %v50
    %v154 = vpop.permute.xlu0 %153
    %155 = vset.pattern.permute.xlu0 1
    %156 = vperm.xlu0 %155, %v51
    %v157 = vpop.permute.xlu0 %156
    %158 = vset.pattern.permute.xlu0 1
    %159 = vperm.xlu0 %158, %v52
    %v160 = vpop.permute.xlu0 %159
    %161 = vset.pattern.permute.xlu0 1
    %162 = vperm.xlu0 %161, %v53
    %v163 = vpop.permute.xlu0 %162
    %164 = vset.pattern.permute.xlu0 1
    %165 = vperm.xlu0 %164, %v54
    %v166 = vpop.permute.xlu0 %165
    %167 = vset.pattern.permute.xlu0 1
    %168 = vperm.xlu0 %167, %v55
    %v169 = vpop.permute.xlu0 %168
    %vm170 = vcmp.eq.s32.totalorder %v57, %v124
    %vm171 = vcmp.eq.s32.totalorder %v57, %v127
    %vm172 = vcmp.eq.s32.totalorder %v57, %v130
    %vm173 = vcmp.eq.s32.totalorder %v57, %v133
    %vm174 = vcmp.eq.s32.totalorder %v57, %v136
    %vm175 = vcmp.eq.s32.totalorder %v57, %v139
    %vm176 = vcmp.eq.s32.totalorder %v57, %v142
    %vm177 = vcmp.eq.s32.totalorder %v57, %v145
    %vm178 = vcmp.eq.s32.totalorder %v57, %v148
    %vm179 = vcmp.eq.s32.totalorder %v57, %v151
    %vm180 = vcmp.eq.s32.totalorder %v57, %v154
    %vm181 = vcmp.eq.s32.totalorder %v57, %v157
    %vm182 = vcmp.eq.s32.totalorder %v57, %v160
    %vm183 = vcmp.eq.s32.totalorder %v57, %v163
    %vm184 = vcmp.eq.s32.totalorder %v57, %v166
    %vm185 = vcmp.eq.s32.totalorder %v57, %v169
    %vm186 = vmor %vm106, %vm170
    %vm187 = vmor %vm107, %vm171
    %vm188 = vmor %vm108, %vm172
    %vm189 = vmor %vm109, %vm173
    %vm190 = vmor %vm110, %vm174
    %vm191 = vmor %vm111, %vm175
    %vm192 = vmor %vm112, %vm176
    %vm193 = vmor %vm113, %vm177
    %vm194 = vmor %vm114, %vm178
    %vm195 = vmor %vm115, %vm179
    %vm196 = vmor %vm116, %vm180
    %vm197 = vmor %vm117, %vm181
    %vm198 = vmor %vm118, %vm182
    %vm199 = vmor %vm119, %vm183
    %vm200 = vmor %vm120, %vm184
    %vm201 = vmor %vm121, %vm185
    %202 = vset.pattern.permute.xlu0 2
    %203 = vperm.xlu0 %202, %v40
    %v204 = vpop.permute.xlu0 %203
    %205 = vset.pattern.permute.xlu0 2
    %206 = vperm.xlu0 %205, %v41
    %v207 = vpop.permute.xlu0 %206
    %208 = vset.pattern.permute.xlu0 2
    %209 = vperm.xlu0 %208, %v42
    %v210 = vpop.permute.xlu0 %209
    %211 = vset.pattern.permute.xlu0 2
    %212 = vperm.xlu0 %211, %v43
    %v213 = vpop.permute.xlu0 %212
    %214 = vset.pattern.permute.xlu0 2
    %215 = vperm.xlu0 %214, %v44
    %v216 = vpop.permute.xlu0 %215
    %217 = vset.pattern.permute.xlu0 2
    %218 = vperm.xlu0 %217, %v45
    %v219 = vpop.permute.xlu0 %218
    %220 = vset.pattern.permute.xlu0 2
    %221 = vperm.xlu0 %220, %v46
    %v222 = vpop.permute.xlu0 %221
    %223 = vset.pattern.permute.xlu0 2
    %224 = vperm.xlu0 %223, %v47
    %v225 = vpop.permute.xlu0 %224
    %226 = vset.pattern.permute.xlu0 2
    %227 = vperm.xlu0 %226, %v48
    %v228 = vpop.permute.xlu0 %227
    %229 = vset.pattern.permute.xlu0 2
    %230 = vperm.xlu0 %229, %v49
    %v231 = vpop.permute.xlu0 %230
    %232 = vset.pattern.permute.xlu0 2
    %233 = vperm.xlu0 %232, %v50
    %v234 = vpop.permute.xlu0 %233
    %235 = vset.pattern.permute.xlu0 2
    %236 = vperm.xlu0 %235, %v51
    %v237 = vpop.permute.xlu0 %236
    %238 = vset.pattern.permute.xlu0 2
    %239 = vperm.xlu0 %238, %v52
    %v240 = vpop.permute.xlu0 %239
    %241 = vset.pattern.permute.xlu0 2
    %242 = vperm.xlu0 %241, %v53
    %v243 = vpop.permute.xlu0 %242
    %244 = vset.pattern.permute.xlu0 2
    %245 = vperm.xlu0 %244, %v54
    %v246 = vpop.permute.xlu0 %245
    %247 = vset.pattern.permute.xlu0 2
    %248 = vperm.xlu0 %247, %v55
    %v249 = vpop.permute.xlu0 %248
    %vm250 = vcmp.eq.s32.totalorder %v57, %v204
    %vm251 = vcmp.eq.s32.totalorder %v57, %v207
    %vm252 = vcmp.eq.s32.totalorder %v57, %v210
    %vm253 = vcmp.eq.s32.totalorder %v57, %v213
    %vm254 = vcmp.eq.s32.totalorder %v57, %v216
    %vm255 = vcmp.eq.s32.totalorder %v57, %v219
    %vm256 = vcmp.eq.s32.totalorder %v57, %v222
    %vm257 = vcmp.eq.s32.totalorder %v57, %v225
    %vm258 = vcmp.eq.s32.totalorder %v57, %v228
    %vm259 = vcmp.eq.s32.totalorder %v57, %v231
    %vm260 = vcmp.eq.s32.totalorder %v57, %v234
    %vm261 = vcmp.eq.s32.totalorder %v57, %v237
    %vm262 = vcmp.eq.s32.totalorder %v57, %v240
    %vm263 = vcmp.eq.s32.totalorder %v57, %v243
    %vm264 = vcmp.eq.s32.totalorder %v57, %v246
    %vm265 = vcmp.eq.s32.totalorder %v57, %v249
    %vm266 = vmor %vm186, %vm250
    %vm267 = vmor %vm187, %vm251
    %vm268 = vmor %vm188, %vm252
    %vm269 = vmor %vm189, %vm253
    %vm270 = vmor %vm190, %vm254
    %vm271 = vmor %vm191, %vm255
    %vm272 = vmor %vm192, %vm256
    %vm273 = vmor %vm193, %vm257
    %vm274 = vmor %vm194, %vm258
    %vm275 = vmor %vm195, %vm259
    %vm276 = vmor %vm196, %vm260
    %vm277 = vmor %vm197, %vm261
    %vm278 = vmor %vm198, %vm262
    %vm279 = vmor %vm199, %vm263
    %vm280 = vmor %vm200, %vm264
    %vm281 = vmor %vm201, %vm265
    %vm282 = vcmp.eq.s32.totalorder %v57, 72
    %vm283 = vmor %vm266, %vm282
    %vm284 = vmor %vm267, %vm282
    %vm285 = vmor %vm268, %vm282
    %vm286 = vmor %vm269, %vm282
    %vm287 = vmor %vm270, %vm282
    %vm288 = vmor %vm271, %vm282
    %vm289 = vmor %vm272, %vm282
    %vm290 = vmor %vm273, %vm282
    %vm291 = vmor %vm274, %vm282
    %vm292 = vmor %vm275, %vm282
    %vm293 = vmor %vm276, %vm282
    %vm294 = vmor %vm277, %vm282
    %vm295 = vmor %vm278, %vm282
    %vm296 = vmor %vm279, %vm282
    %vm297 = vmor %vm280, %vm282
    %vm298 = vmor %vm281, %vm282
    %v299 = vsel %vm283, 1, 0
    %v300 = vsel %vm284, 1, 0
    %v301 = vsel %vm285, 1, 0
    %v302 = vsel %vm286, 1, 0
    %v303 = vsel %vm287, 1, 0
    %v304 = vsel %vm288, 1, 0
    %v305 = vsel %vm289, 1, 0
    %v306 = vsel %vm290, 1, 0
    %v307 = vsel %vm291, 1, 0
    %v308 = vsel %vm292, 1, 0
    %v309 = vsel %vm293, 1, 0
    %v310 = vsel %vm294, 1, 0
    %v311 = vsel %vm295, 1, 0
    %v312 = vsel %vm296, 1, 0
    %v313 = vsel %vm297, 1, 0
    %v314 = vsel %vm298, 1, 0
    %v315 = vcvt.s32.f32 %v299
    %v316 = vcvt.s32.f32 %v300
    %v317 = vcvt.s32.f32 %v301
    %v318 = vcvt.s32.f32 %v302
    %v319 = vcvt.s32.f32 %v303
    %v320 = vcvt.s32.f32 %v304
    %v321 = vcvt.s32.f32 %v305
    %v322 = vcvt.s32.f32 %v306
    %v323 = vcvt.s32.f32 %v307
    %v324 = vcvt.s32.f32 %v308
    %v325 = vcvt.s32.f32 %v309
    %v326 = vcvt.s32.f32 %v310
    %v327 = vcvt.s32.f32 %v311
    %v328 = vcvt.s32.f32 %v312
    %v329 = vcvt.s32.f32 %v313
    %v330 = vcvt.s32.f32 %v314
    %v331 = vld [vmem:[%s1] sm:$0xff]
    %v332 = vld [vmem:[%s1 + $0x8] sm:$0xff]
    %v333 = vld [vmem:[%s1 + $0x10] sm:$0xff]
    %v334 = vld [vmem:[%s1 + $0x18] sm:$0xff]
    %v335 = vld [vmem:[%s1 + $0x20] sm:$0xff]
    %v336 = vld [vmem:[%s1 + $0x28] sm:$0xff]
    %v337 = vld [vmem:[%s1 + $0x30] sm:$0xff]
    %v338 = vld [vmem:[%s1 + $0x38] sm:$0xff]
    %v339 = vld [vmem:[%s1 + $0x40] sm:$0xff]
    %v340 = vld [vmem:[%s1 + $0x48] sm:$0xff]
    %v341 = vld [vmem:[%s1 + $0x50] sm:$0xff]
    %v342 = vld [vmem:[%s1 + $0x58] sm:$0xff]
    %v343 = vld [vmem:[%s1 + $0x60] sm:$0xff]
    %v344 = vld [vmem:[%s1 + $0x68] sm:$0xff]
    %v345 = vld [vmem:[%s1 + $0x70] sm:$0xff]
    %v346 = vld [vmem:[%s1 + $0x78] sm:$0xff]
    %347 = vmatprep.subr.mxu0 0.0
    %348 = vmatpush1.msra.mxu0 %v331
    %349 = vmatprep.subr.mxu0 0.0
    %350 = vmatpush1.msra.mxu0 %v332
    %351 = vmatprep.subr.mxu0 0.0
    %352 = vmatpush1.msra.mxu0 %v333
    %353 = vmatprep.subr.mxu0 0.0
    %354 = vmatpush1.msra.mxu0 %v334
    %355 = vmatprep.subr.mxu0 0.0
    %356 = vmatpush1.msra.mxu0 %v335
    %357 = vmatprep.subr.mxu0 0.0
    %358 = vmatpush1.msra.mxu0 %v336
    %359 = vmatprep.subr.mxu0 0.0
    %360 = vmatpush1.msra.mxu0 %v337
    %361 = vmatprep.subr.mxu0 0.0
    %362 = vmatpush1.msra.mxu0 %v338
    %363 = vmatprep.subr.mxu0 0.0
    %364 = vmatpush1.msra.mxu0 %v339
    %365 = vmatprep.subr.mxu0 0.0
    %366 = vmatpush1.msra.mxu0 %v340
    %367 = vmatprep.subr.mxu0 0.0
    %368 = vmatpush1.msra.mxu0 %v341
    %369 = vmatprep.subr.mxu0 0.0
    %370 = vmatpush1.msra.mxu0 %v342
    %371 = vmatprep.subr.mxu0 0.0
    %372 = vmatpush1.msra.mxu0 %v343
    %373 = vmatprep.subr.mxu0 0.0
    %374 = vmatpush1.msra.mxu0 %v344
    %375 = vmatprep.subr.mxu0 0.0
    %376 = vmatpush1.msra.mxu0 %v345
    %377 = vmatprep.subr.mxu0 0.0
    %378 = vmatpush1.msra.mxu0 %v346
    %379 = vmatprep.subr.mxu0 0.0
    %380 = vmatpush1.msra.mxu0 0.0
    %381 = vmatprep.subr.mxu0 0.0
    %382 = vmatpush1.msra.mxu0 0.0
    %383 = vmatprep.subr.mxu0 0.0
    %384 = vmatpush1.msra.mxu0 0.0
    %385 = vmatprep.subr.mxu0 0.0
    %386 = vmatpush1.msra.mxu0 0.0
    %387 = vmatprep.subr.mxu0 0.0
    %388 = vmatpush1.msra.mxu0 0.0
    %389 = vmatprep.subr.mxu0 0.0
    %390 = vmatpush1.msra.mxu0 0.0
    %391 = vmatprep.subr.mxu0 0.0
    %392 = vmatpush1.msra.mxu0 0.0
    %393 = vmatprep.subr.mxu0 0.0
    %394 = vmatpush1.msra.mxu0 0.0
    %395 = vmatprep.subr.mxu0 0.0
    %396 = vmatpush1.msra.mxu0 0.0
    %397 = vmatprep.subr.mxu0 0.0
    %398 = vmatpush1.msra.mxu0 0.0
    %399 = vmatprep.subr.mxu0 0.0
    %400 = vmatpush1.msra.mxu0 0.0
    %401 = vmatprep.subr.mxu0 0.0
    %402 = vmatpush1.msra.mxu0 0.0
    %403 = vmatprep.subr.mxu0 0.0
    %404 = vmatpush1.msra.mxu0 0.0
    %405 = vmatprep.subr.mxu0 0.0
    %406 = vmatpush1.msra.mxu0 0.0
    %407 = vmatprep.subr.mxu0 0.0
    %408 = vmatpush1.msra.mxu0 0.0
    %409 = vmatprep.subr.mxu0 0.0
    %410 = vmatpush1.msra.mxu0 0.0
    %411 = vmatprep.mubr.f32.mxu0 0.0
    %412 = vmatmul.mubr.f32.gmra.mrb[0].mxu0 %v315
    %v413 = vpop.f32.mrb[0].mxu0
    %v414 = vadd.f32 0.0, %v413
    %v415 = vpop.f32.mrb[0].mxu0
    %416 = vmatprep.mubr.f32.mxu0 0.0
    %417 = vmatmul.mubr.f32.gmra.mrb[0].mxu0 %v316
    %v418 = vpop.f32.mrb[0].mxu0
    %v419 = vadd.f32 0.0, %v418
    %v420 = vpop.f32.mrb[0].mxu0
    %421 = vmatprep.mubr.f32.mxu0 0.0
    %422 = vmatmul.mubr.f32.gmra.mrb[0].mxu0 %v317
    %v423 = vpop.f32.mrb[0].mxu0
    %v424 = vadd.f32 0.0, %v423
    %v425 = vpop.f32.mrb[0].mxu0
    %426 = vmatprep.mubr.f32.mxu0 0.0
    %427 = vmatmul.mubr.f32.gmra.mrb[0].mxu0 %v318
    %v428 = vpop.f32.mrb[0].mxu0
    %v429 = vadd.f32 0.0, %v428
    %v430 = vpop.f32.mrb[0].mxu0
    %431 = vmatprep.mubr.f32.mxu0 0.0
    %432 = vmatmul.mubr.f32.gmra.mrb[0].mxu0 %v319
    %v433 = vpop.f32.mrb[0].mxu0
    %v434 = vadd.f32 0.0, %v433
    %v435 = vpop.f32.mrb[0].mxu0
    %436 = vmatprep.mubr.f32.mxu0 0.0
    %437 = vmatmul.mubr.f32.gmra.mrb[0].mxu0 %v320
    %v438 = vpop.f32.mrb[0].mxu0
    %v439 = vadd.f32 0.0, %v438
    %v440 = vpop.f32.mrb[0].mxu0
    %441 = vmatprep.mubr.f32.mxu0 0.0
    %442 = vmatmul.mubr.f32.gmra.mrb[0].mxu0 %v321
    %v443 = vpop.f32.mrb[0].mxu0
    %v444 = vadd.f32 0.0, %v443
    %v445 = vpop.f32.mrb[0].mxu0
    %446 = vmatprep.mubr.f32.mxu0 0.0
    %447 = vmatmul.mubr.f32.gmra.mrb[0].mxu0 %v322
    %v448 = vpop.f32.mrb[0].mxu0
    %v449 = vadd.f32 0.0, %v448
    %v450 = vpop.f32.mrb[0].mxu0
    %451 = vmatprep.mubr.f32.mxu0 0.0
    %452 = vmatmul.mubr.f32.gmra.mrb[0].mxu0 %v323
    %v453 = vpop.f32.mrb[0].mxu0
    %v454 = vadd.f32 0.0, %v453
    %v455 = vpop.f32.mrb[0].mxu0
    %456 = vmatprep.mubr.f32.mxu0 0.0
    %457 = vmatmul.mubr.f32.gmra.mrb[0].mxu0 %v324
    %v458 = vpop.f32.mrb[0].mxu0
    %v459 = vadd.f32 0.0, %v458
    %v460 = vpop.f32.mrb[0].mxu0
    %461 = vmatprep.mubr.f32.mxu0 0.0
    %462 = vmatmul.mubr.f32.gmra.mrb[0].mxu0 %v325
    %v463 = vpop.f32.mrb[0].mxu0
    %v464 = vadd.f32 0.0, %v463
    %v465 = vpop.f32.mrb[0].mxu0
    %466 = vmatprep.mubr.f32.mxu0 0.0
    %467 = vmatmul.mubr.f32.gmra.mrb[0].mxu0 %v326
    %v468 = vpop.f32.mrb[0].mxu0
    %v469 = vadd.f32 0.0, %v468
    %v470 = vpop.f32.mrb[0].mxu0
    %471 = vmatprep.mubr.f32.mxu0 0.0
    %472 = vmatmul.mubr.f32.gmra.mrb[0].mxu0 %v327
    %v473 = vpop.f32.mrb[0].mxu0
    %v474 = vadd.f32 0.0, %v473
    %v475 = vpop.f32.mrb[0].mxu0
    %476 = vmatprep.mubr.f32.mxu0 0.0
    %477 = vmatmul.mubr.f32.gmra.mrb[0].mxu0 %v328
    %v478 = vpop.f32.mrb[0].mxu0
    %v479 = vadd.f32 0.0, %v478
    %v480 = vpop.f32.mrb[0].mxu0
    %481 = vmatprep.mubr.f32.mxu0 0.0
    %482 = vmatmul.mubr.f32.gmra.mrb[0].mxu0 %v329
    %v483 = vpop.f32.mrb[0].mxu0
    %v484 = vadd.f32 0.0, %v483
    %v485 = vpop.f32.mrb[0].mxu0
    %486 = vmatprep.mubr.f32.mxu0 0.0
    %487 = vmatmul.mubr.f32.gmra.mrb[0].mxu0 %v330
    %v488 = vpop.f32.mrb[0].mxu0
    %v489 = vadd.f32 0.0, %v488
    %v490 = vpop.f32.mrb[0].mxu0
    %491 = vdwg.mxu0
    %v492 = vmax.f32 %v414, 0.0
    %v493 = vmax.f32 %v419, 0.0
    %v494 = vmax.f32 %v424, 0.0
    %v495 = vmax.f32 %v429, 0.0
    %v496 = vmax.f32 %v434, 0.0
    %v497 = vmax.f32 %v439, 0.0
    %v498 = vmax.f32 %v444, 0.0
    %v499 = vmax.f32 %v449, 0.0
    %v500 = vmax.f32 %v454, 0.0
    %v501 = vmax.f32 %v459, 0.0
    %v502 = vmax.f32 %v464, 0.0
    %v503 = vmax.f32 %v469, 0.0
    %v504 = vmax.f32 %v474, 0.0
    %v505 = vmax.f32 %v479, 0.0
    %v506 = vmax.f32 %v484, 0.0
    %v507 = vmax.f32 %v489, 0.0
    %v508 = vld [vmem:[#allocation3] sm:$0xff]
    %v509 = vld [vmem:[#allocation3 + $0x8] sm:$0xff]
    %v510 = vld [vmem:[#allocation3 + $0x10] sm:$0xff]
    %v511 = vld [vmem:[#allocation3 + $0x18] sm:$0xff]
    %v512 = vld [vmem:[#allocation3 + $0x20] sm:$0xff]
    %v513 = vld [vmem:[#allocation3 + $0x28] sm:$0xff]
    %v514 = vld [vmem:[#allocation3 + $0x30] sm:$0xff]
    %v515 = vld [vmem:[#allocation3 + $0x38] sm:$0xff]
    %v516 = vld [vmem:[#allocation3 + $0x40] sm:$0xff]
    %v517 = vld [vmem:[#allocation3 + $0x48] sm:$0xff]
    %v518 = vld [vmem:[#allocation3 + $0x50] sm:$0xff]
    %v519 = vld [vmem:[#allocation3 + $0x58] sm:$0xff]
    %v520 = vld [vmem:[#allocation3 + $0x60] sm:$0xff]
    %v521 = vld [vmem:[#allocation3 + $0x68] sm:$0xff]
    %v522 = vld [vmem:[#allocation3 + $0x70] sm:$0xff]
    %v523 = vld [vmem:[#allocation3 + $0x78] sm:$0xff]
    %v524 = vld [vmem:[%s3] sm:$0x1]
    %v526 = vlaneseq
    %v527 = vshrl.u32 %v526, 7
    %v528 = vsub.s32 0, %v527
    %v529 = vrot.slane %v524, %v528
    %531 = vmatprep.subr.mxu0 0.0
    %532 = vmatpush1.msra.mxu0 %v508
    %533 = vmatprep.subr.mxu0 0.0
    %534 = vmatpush1.msra.mxu0 %v509
    %535 = vmatprep.subr.mxu0 0.0
    %536 = vmatpush1.msra.mxu0 %v510
    %537 = vmatprep.subr.mxu0 0.0
    %538 = vmatpush1.msra.mxu0 %v511
    %539 = vmatprep.subr.mxu0 0.0
    %540 = vmatpush1.msra.mxu0 %v512
    %541 = vmatprep.subr.mxu0 0.0
    %542 = vmatpush1.msra.mxu0 %v513
    %543 = vmatprep.subr.mxu0 0.0
    %544 = vmatpush1.msra.mxu0 %v514
    %545 = vmatprep.subr.mxu0 0.0
    %546 = vmatpush1.msra.mxu0 %v515
    %547 = vmatprep.subr.mxu0 0.0
    %548 = vmatpush1.msra.mxu0 %v516
    %549 = vmatprep.subr.mxu0 0.0
    %550 = vmatpush1.msra.mxu0 %v517
    %551 = vmatprep.subr.mxu0 0.0
    %552 = vmatpush1.msra.mxu0 %v518
    %553 = vmatprep.subr.mxu0 0.0
    %554 = vmatpush1.msra.mxu0 %v519
    %555 = vmatprep.subr.mxu0 0.0
    %556 = vmatpush1.msra.mxu0 %v520
    %557 = vmatprep.subr.mxu0 0.0
    %558 = vmatpush1.msra.mxu0 %v521
    %559 = vmatprep.subr.mxu0 0.0
    %560 = vmatpush1.msra.mxu0 %v522
    %561 = vmatprep.subr.mxu0 0.0
    %562 = vmatpush1.msra.mxu0 %v523
    %563 = vmatprep.subr.mxu0 0.0
    %564 = vmatpush1.msra.mxu0 0.0
    %565 = vmatprep.subr.mxu0 0.0
    %566 = vmatpush1.msra.mxu0 0.0
    %567 = vmatprep.subr.mxu0 0.0
    %568 = vmatpush1.msra.mxu0 0.0
    %569 = vmatprep.subr.mxu0 0.0
    %570 = vmatpush1.msra.mxu0 0.0
    %571 = vmatprep.subr.mxu0 0.0
    %572 = vmatpush1.msra.mxu0 0.0
    %573 = vmatprep.subr.mxu0 0.0
    %574 = vmatpush1.msra.mxu0 0.0
    %575 = vmatprep.subr.mxu0 0.0
    %576 = vmatpush1.msra.mxu0 0.0
    %577 = vmatprep.subr.mxu0 0.0
    %578 = vmatpush1.msra.mxu0 0.0
    %579 = vmatprep.subr.mxu0 0.0
    %580 = vmatpush1.msra.mxu0 0.0
    %581 = vmatprep.subr.mxu0 0.0
    %582 = vmatpush1.msra.mxu0 0.0
    %583 = vmatprep.subr.mxu0 0.0
    %584 = vmatpush1.msra.mxu0 0.0
    %585 = vmatprep.subr.mxu0 0.0
    %586 = vmatpush1.msra.mxu0 0.0
    %587 = vmatprep.subr.mxu0 0.0
    %588 = vmatpush1.msra.mxu0 0.0
    %589 = vmatprep.subr.mxu0 0.0
    %590 = vmatpush1.msra.mxu0 0.0
    %591 = vmatprep.subr.mxu0 0.0
    %592 = vmatpush1.msra.mxu0 0.0
    %593 = vmatprep.subr.mxu0 0.0
    %594 = vmatpush1.msra.mxu0 0.0
    %595 = vmatprep.mubr.f32.mxu0 0.0
    %596 = vmatmul.mubr.f32.gmra.mrb[0].mxu0 %v492
    %v597 = vpop.f32.mrb[0].mxu0
    %v598 = vadd.f32 %v529, %v597
    %v599 = vpop.f32.mrb[0].mxu0
    %600 = vmatprep.mubr.f32.mxu0 0.0
    %601 = vmatmul.mubr.f32.gmra.mrb[0].mxu0 %v493
    %v602 = vpop.f32.mrb[0].mxu0
    %v603 = vadd.f32 %v529, %v602
    %v604 = vpop.f32.mrb[0].mxu0
    %605 = vmatprep.mubr.f32.mxu0 0.0
    %606 = vmatmul.mubr.f32.gmra.mrb[0].mxu0 %v494
    %v607 = vpop.f32.mrb[0].mxu0
    %v608 = vadd.f32 %v529, %v607
    %v609 = vpop.f32.mrb[0].mxu0
    %610 = vmatprep.mubr.f32.mxu0 0.0
    %611 = vmatmul.mubr.f32.gmra.mrb[0].mxu0 %v495
    %v612 = vpop.f32.mrb[0].mxu0
    %v613 = vadd.f32 %v529, %v612
    %v614 = vpop.f32.mrb[0].mxu0
    %615 = vmatprep.mubr.f32.mxu0 0.0
    %616 = vmatmul.mubr.f32.gmra.mrb[0].mxu0 %v496
    %v617 = vpop.f32.mrb[0].mxu0
    %v618 = vadd.f32 %v529, %v617
    %v619 = vpop.f32.mrb[0].mxu0
    %620 = vmatprep.mubr.f32.mxu0 0.0
    %621 = vmatmul.mubr.f32.gmra.mrb[0].mxu0 %v497
    %v622 = vpop.f32.mrb[0].mxu0
    %v623 = vadd.f32 %v529, %v622
    %v624 = vpop.f32.mrb[0].mxu0
    %625 = vmatprep.mubr.f32.mxu0 0.0
    %626 = vmatmul.mubr.f32.gmra.mrb[0].mxu0 %v498
    %v627 = vpop.f32.mrb[0].mxu0
    %v628 = vadd.f32 %v529, %v627
    %v629 = vpop.f32.mrb[0].mxu0
    %630 = vmatprep.mubr.f32.mxu0 0.0
    %631 = vmatmul.mubr.f32.gmra.mrb[0].mxu0 %v499
    %v632 = vpop.f32.mrb[0].mxu0
    %v633 = vadd.f32 %v529, %v632
    %v634 = vpop.f32.mrb[0].mxu0
    %635 = vmatprep.mubr.f32.mxu0 0.0
    %636 = vmatmul.mubr.f32.gmra.mrb[0].mxu0 %v500
    %v637 = vpop.f32.mrb[0].mxu0
    %v638 = vadd.f32 %v529, %v637
    %v639 = vpop.f32.mrb[0].mxu0
    %640 = vmatprep.mubr.f32.mxu0 0.0
    %641 = vmatmul.mubr.f32.gmra.mrb[0].mxu0 %v501
    %v642 = vpop.f32.mrb[0].mxu0
    %v643 = vadd.f32 %v529, %v642
    %v644 = vpop.f32.mrb[0].mxu0
    %645 = vmatprep.mubr.f32.mxu0 0.0
    %646 = vmatmul.mubr.f32.gmra.mrb[0].mxu0 %v502
    %v647 = vpop.f32.mrb[0].mxu0
    %v648 = vadd.f32 %v529, %v647
    %v649 = vpop.f32.mrb[0].mxu0
    %650 = vmatprep.mubr.f32.mxu0 0.0
    %651 = vmatmul.mubr.f32.gmra.mrb[0].mxu0 %v503
    %v652 = vpop.f32.mrb[0].mxu0
    %v653 = vadd.f32 %v529, %v652
    %v654 = vpop.f32.mrb[0].mxu0
    %655 = vmatprep.mubr.f32.mxu0 0.0
    %656 = vmatmul.mubr.f32.gmra.mrb[0].mxu0 %v504
    %v657 = vpop.f32.mrb[0].mxu0
    %v658 = vadd.f32 %v529, %v657
    %v659 = vpop.f32.mrb[0].mxu0
    %660 = vmatprep.mubr.f32.mxu0 0.0
    %661 = vmatmul.mubr.f32.gmra.mrb[0].mxu0 %v505
    %v662 = vpop.f32.mrb[0].mxu0
    %v663 = vadd.f32 %v529, %v662
    %v664 = vpop.f32.mrb[0].mxu0
    %665 = vmatprep.mubr.f32.mxu0 0.0
    %666 = vmatmul.mubr.f32.gmra.mrb[0].mxu0 %v506
    %v667 = vpop.f32.mrb[0].mxu0
    %v668 = vadd.f32 %v529, %v667
    %v669 = vpop.f32.mrb[0].mxu0
    %670 = vmatprep.mubr.f32.mxu0 0.0
    %671 = vmatmul.mubr.f32.gmra.mrb[0].mxu0 %v507
    %v672 = vpop.f32.mrb[0].mxu0
    %v673 = vadd.f32 %v529, %v672
    %v674 = vpop.f32.mrb[0].mxu0
    %675 = vdwg.mxu0
    %v676 = vmax.f32 %v598, 0.0
    %v677 = vmax.f32 %v603, 0.0
    %v678 = vmax.f32 %v608, 0.0
    %v679 = vmax.f32 %v613, 0.0
    %v680 = vmax.f32 %v618, 0.0
    %v681 = vmax.f32 %v623, 0.0
    %v682 = vmax.f32 %v628, 0.0
    %v683 = vmax.f32 %v633, 0.0
    %v684 = vmax.f32 %v638, 0.0
    %v685 = vmax.f32 %v643, 0.0
    %v686 = vmax.f32 %v648, 0.0
    %v687 = vmax.f32 %v653, 0.0
    %v688 = vmax.f32 %v658, 0.0
    %v689 = vmax.f32 %v663, 0.0
    %v690 = vmax.f32 %v668, 0.0
    %v691 = vmax.f32 %v673, 0.0
    %v692 = vld [vmem:[%s4] sm:$0x1]
    %v693 = vld [vmem:[#allocation2] sm:$0x1]
    %695 = vset.pattern.permute.xlu0 0
    %696 = vperm.xlu0 %695, %v693
    %v697 = vpop.permute.xlu0 %696
    %v699 = vlaneseq
    %v700 = vshrl.u32 %v699, 7
    %v701 = vsub.s32 0, %v700
    %v702 = vrot.slane %v697, %v701
    %703 = vmatprep.subr.mxu0 0.0
    %704 = vmatpush1.xpose.msra.mxu0 %v676
    %705 = vmatprep.subr.mxu0 0.0
    %706 = vmatpush1.xpose.msra.mxu0 %v677
    %707 = vmatprep.subr.mxu0 0.0
    %708 = vmatpush1.xpose.msra.mxu0 %v678
    %709 = vmatprep.subr.mxu0 0.0
    %710 = vmatpush1.xpose.msra.mxu0 %v679
    %711 = vmatprep.subr.mxu0 0.0
    %712 = vmatpush1.xpose.msra.mxu0 %v680
    %713 = vmatprep.subr.mxu0 0.0
    %714 = vmatpush1.xpose.msra.mxu0 %v681
    %715 = vmatprep.subr.mxu0 0.0
    %716 = vmatpush1.xpose.msra.mxu0 %v682
    %717 = vmatprep.subr.mxu0 0.0
    %718 = vmatpush1.xpose.msra.mxu0 %v683
    %719 = vmatprep.subr.mxu0 0.0
    %720 = vmatpush1.xpose.msra.mxu0 %v684
    %721 = vmatprep.subr.mxu0 0.0
    %722 = vmatpush1.xpose.msra.mxu0 %v685
    %723 = vmatprep.subr.mxu0 0.0
    %724 = vmatpush1.xpose.msra.mxu0 %v686
    %725 = vmatprep.subr.mxu0 0.0
    %726 = vmatpush1.xpose.msra.mxu0 %v687
    %727 = vmatprep.subr.mxu0 0.0
    %728 = vmatpush1.xpose.msra.mxu0 %v688
    %729 = vmatprep.subr.mxu0 0.0
    %730 = vmatpush1.xpose.msra.mxu0 %v689
    %731 = vmatprep.subr.mxu0 0.0
    %732 = vmatpush1.xpose.msra.mxu0 %v690
    %733 = vmatprep.subr.mxu0 0.0
    %734 = vmatpush1.xpose.msra.mxu0 %v691
    %735 = vmatprep.subr.mxu0 0.0
    %736 = vmatpush1.xpose.msra.mxu0 0.0
    %737 = vmatprep.subr.mxu0 0.0
    %738 = vmatpush1.xpose.msra.mxu0 0.0
    %739 = vmatprep.subr.mxu0 0.0
    %740 = vmatpush1.xpose.msra.mxu0 0.0
    %741 = vmatprep.subr.mxu0 0.0
    %742 = vmatpush1.xpose.msra.mxu0 0.0
    %743 = vmatprep.subr.mxu0 0.0
    %744 = vmatpush1.xpose.msra.mxu0 0.0
    %745 = vmatprep.subr.mxu0 0.0
    %746 = vmatpush1.xpose.msra.mxu0 0.0
    %747 = vmatprep.subr.mxu0 0.0
    %748 = vmatpush1.xpose.msra.mxu0 0.0
    %749 = vmatprep.subr.mxu0 0.0
    %750 = vmatpush1.xpose.msra.mxu0 0.0
    %751 = vmatprep.subr.mxu0 0.0
    %752 = vmatpush1.xpose.msra.mxu0 0.0
    %753 = vmatprep.subr.mxu0 0.0
    %754 = vmatpush1.xpose.msra.mxu0 0.0
    %755 = vmatprep.subr.mxu0 0.0
    %756 = vmatpush1.xpose.msra.mxu0 0.0
    %757 = vmatprep.subr.mxu0 0.0
    %758 = vmatpush1.xpose.msra.mxu0 0.0
    %759 = vmatprep.subr.mxu0 0.0
    %760 = vmatpush1.xpose.msra.mxu0 0.0
    %761 = vmatprep.subr.mxu0 0.0
    %762 = vmatpush1.xpose.msra.mxu0 0.0
    %763 = vmatprep.subr.mxu0 0.0
    %764 = vmatpush1.xpose.msra.mxu0 0.0
    %765 = vmatprep.subr.mxu0 0.0
    %766 = vmatpush1.xpose.msra.mxu0 0.0
    %767 = vmatprep.mubr.f32.mxu0 0.0
    %768 = vmatmul.mubr.f32.gmra.mrb[0].mxu0 %v692
    %v769 = vpop.f32.mrb[0].mxu0
    %v770 = vadd.f32 %v702, %v769
    %v771 = vpop.f32.mrb[0].mxu0
    %772 = vdwg.mxu0
    %773 = vst [vmem:[#allocation6] sm:$0x1] %v770
    // Predicated region
    $region30: #{tpu_custom_call.1} parent=1 // pred_check
      _
    $region31: #{tpu_custom_call.1} parent=1 // pred_check_branch
      %775 = sbr.rel (0) target = $region33
    $region32: #{tpu_custom_call.1} parent=1 // pred_region
      %s777 = ssub.s32 16, 16
      %778 = vsyncadd [#allocation5], %s777
      %s780 = sshll.u32 [#allocation6], 4
      %s781 = int_to_ptr.vmem [resolvable:$true] %s780
      %783 = dma.vmem_to_hbm [thread:$0]  %s781, 16, %s6, [#allocation5]
    $region33: #{tpu_custom_call.1} parent=1 // pred_fallthru
      _
    // Predicated region
    $region34: #{tpu_custom_call.1} parent=1 // pred_check
      _
    $region35: #{tpu_custom_call.1} parent=1 // pred_check_branch
      %785 = sbr.rel (0) target = $region37
    $region36: #{tpu_custom_call.1} parent=1 // pred_region
      %786 = dma.done [#allocation5], 16
    $region37: #{tpu_custom_call.1} parent=1 // pred_fallthru
      _
    %787 = vsyncpa [#allocation4], 1
    %788 = vsyncpa [#allocation5], 1

</llo_original>
